<compile_context>
chip_gen: v5e
topology: v5e:2x2
jax: 0.10.0
libtpu: 0.0.40
codegen_flags: <defaults>
</compile_context>

<pallas_src>
import jax
import jax.numpy as jnp
from jax.experimental import pallas as pl
from jax.experimental.pallas import tpu as pltpu

_MiB = 1024 * 1024


def linear_seq_attn_kernel(x_ref, mask_ref, w_ref, b_ref, alpha_ref, wx_ref):
    w = w_ref[...].astype(jnp.float32)[0]       # (H,)
    b = b_ref[0, 0]                             # scalar bias from SMEM

    # Score pass: Linear(H -> 1).  Read the x tile from its input buffer and
    # upcast inside the expression (no tile-sized f32 copy survives this line).
    scores = jnp.sum(x_ref[...].astype(jnp.float32) * w[None, None, :],
                     axis=-1) + b                                        # (TB, L)

    # masked_fill(x_mask, -inf): large finite negative keeps fully padded rows
    # NaN-free; for partially padded rows exp(-1e30 - max) underflows to 0,
    # matching the PyTorch -inf semantics in f32.
    scores = jnp.where(mask_ref[...] != 0, jnp.float32(-1e30), scores)

    # Softmax over the sequence dimension.  Exact divide: the kernel is
    # DMA-bound, so it is free and keeps alpha bit-accurate.
    m = jnp.max(scores, axis=-1, keepdims=True)                          # (TB, 1)
    e = jnp.exp(scores - m)                                              # (TB, L)
    alpha = e / jnp.sum(e, axis=-1, keepdims=True)                       # (TB, L)

    # weighted_avg: alpha.unsqueeze(1).bmm(x).squeeze(1) -> (TB, H).
    # Broadcast-multiply (VPU) + reduce over L (XLU) instead of M=1 MXU
    # matmuls; these slots are otherwise idle under the input DMA.
    wx = jnp.sum(alpha[:, :, None] * x_ref[...].astype(jnp.float32), axis=1)

    alpha_ref[...] = alpha.astype(alpha_ref.dtype)
    wx_ref[...] = wx.astype(wx_ref.dtype)


def _vmem_limit_bytes():
    """Generation-aware scoped-VMEM limit: ~3/4 of physical, capped at 64 MiB.

    -> 48 MiB on v7x (64 MiB physical/TC), 64 MiB on v5e/v6e (128 MiB physical).
    """
    try:
        phys = int(pltpu.get_tpu_info().vmem_capacity_bytes)
    except Exception:
        phys = 64 * _MiB  # conservative fallback (v7x per-TensorCore VMEM)
    return int(min(phys * 3 // 4, 64 * _MiB))


def _pick_batch_tile(B, L, H, x_itemsize, mask_itemsize, vmem_limit_bytes):
    """Largest batch tile whose pipelined footprint fits the VMEM budget,
    while keeping >= 2 grid steps (v7x megacore) whenever the batch allows."""
    # Per-batch-row footprint estimate:
    #   double-buffered x tile                    : 2 * L*H*x_itemsize
    #   one f32 broadcast/product temp per pass
    #   (score / weighted-sum; not co-live)       : L*H*4
    #   double-buffered mask + f32 score temps    : L*(2*mask_itemsize + 8)
    #   double-buffered alpha / weighted_x outputs: ~8*(L + H)
    per_row = (L * H * (2 * x_itemsize + 4)
               + L * (2 * mask_itemsize + 8)
               + 8 * (L + H))
    budget = int(vmem_limit_bytes * 0.85)
    tb = budget // max(per_row, 1)

    # v7x megacore: keep at least 2 grid steps so both TensorCores get work
    # (only when each half can stay sublane-aligned; no-op on 1-TC chips).
    half = -(-B // 2)
    if half >= 8:
        tb = min(tb, half)

    if tb >= B:
        return int(B)
    tb = (tb // 8) * 8            # sublane alignment for the 2-D (tb, L) blocks
    if tb < 8:
        # TODO(synk): fall back to tiling L as a second "arbitrary" grid axis
        # with an online-softmax accumulator for very large per-row L*H.
        raise ValueError(
            f"LinearSeqAttn: per-row footprint (~{per_row} B) exceeds the VMEM "
            f"budget ({vmem_limit_bytes} B); pass batch_tile= explicitly or "
            f"reduce L*H.")
    return int(tb)


def linear_seq_attn(x, x_mask, weight, bias, *, batch_tile=None):
    """x: (B, L, H) f32/bf16; x_mask: (B, L) any dtype (nonzero = pad);
    weight: (1, H); bias: (1, 1).

    Returns (alpha, weighted_x): alpha (B, L) f32, weighted_x (B, H) f32.
    """
    B, L, H = x.shape
    x_itemsize = jnp.dtype(x.dtype).itemsize
    mask_itemsize = jnp.dtype(x_mask.dtype).itemsize
    vmem_limit = _vmem_limit_bytes()

    if batch_tile is None:
        batch_tile = _pick_batch_tile(B, L, H, x_itemsize, mask_itemsize, vmem_limit)
    tb = int(batch_tile)
    grid = (pl.cdiv(B, tb),)

    # Advisory cost: strictly memory bound (~1 flop/byte); lets XLA overlap
    # surrounding HLO with this custom call.
    bytes_accessed = int(B * L * H * x_itemsize          # x read
                         + B * L * mask_itemsize         # mask read
                         + H * 4 + 4                     # weight + bias
                         + B * L * 4 + B * H * 4)        # alpha + weighted_x writes
    cost = pl.CostEstimate(flops=int(4 * B * L * H),
                           transcendentals=int(B * L),
                           bytes_accessed=bytes_accessed)

    return pl.pallas_call(
        linear_seq_attn_kernel,
        grid=grid,
        in_specs=[
            pl.BlockSpec((tb, L, H), lambda i: (i, 0, 0)),        # x tile (pipelined)
            pl.BlockSpec((tb, L), lambda i: (i, 0)),              # mask tile
            pl.BlockSpec((1, H), lambda i: (0, 0)),               # weight (replicated)
            pl.BlockSpec((1, 1), lambda i: (0, 0),
                         memory_space=pltpu.MemorySpace.SMEM),    # bias scalar in SMEM
        ],
        out_specs=(
            pl.BlockSpec((tb, L), lambda i: (i, 0)),              # alpha
            pl.BlockSpec((tb, H), lambda i: (i, 0)),              # weighted_x
        ),
        out_shape=(
            jax.ShapeDtypeStruct((B, L), jnp.float32),
            jax.ShapeDtypeStruct((B, H), jnp.float32),
        ),
        compiler_params=pltpu.CompilerParams(
            dimension_semantics=("parallel",),        # batch tiles are independent
            vmem_limit_bytes=vmem_limit,              # explicit, generation-aware
        ),
        cost_estimate=cost,
    )(x, x_mask, weight, bias)


if __name__ == "__main__":
    B, L, H = 16, 8, 32   # small, but exercises a multi-step (grid=(2,)) pipeline

    key = jax.random.PRNGKey(0)
    kx, kw, kb = jax.random.split(key, 3)

    x = jax.random.normal(kx, (B, L, H), dtype=jnp.float32)

    # padding mask (int32, nonzero = padding): fully valid rows, partially
    # padded rows, and one fully padded row (NaN-free masking path).
    x_mask = jnp.zeros((B, L), dtype=jnp.int32)
    x_mask = x_mask.at[1, L - 3:].set(1)
    x_mask = x_mask.at[5, L - 5:].set(1)
    x_mask = x_mask.at[7, :].set(1)            # fully padded row

    # nn.Linear(H, 1): weight (1, H), bias (1, 1) -- deterministic init
    bound = 1.0 / (H ** 0.5)
    weight = jax.random.uniform(kw, (1, H), dtype=jnp.float32,
                                minval=-bound, maxval=bound)
    bias = jax.random.uniform(kb, (1, 1), dtype=jnp.float32,
                              minval=-bound, maxval=bound)

    alpha, weighted_x = linear_seq_attn(x, x_mask, weight, bias)
    jax.block_until_ready((alpha, weighted_x))

    # pure-JAX reference with the original PyTorch (-inf masking) semantics
    scores_ref = jnp.einsum('blh,h->bl', x, weight[0]) + bias[0, 0]
    alpha_ref = jax.nn.softmax(jnp.where(x_mask != 0, -jnp.inf, scores_ref), axis=-1)
    wx_ref = jnp.einsum('bl,blh->bh', alpha_ref, x)

    valid = jnp.any(x_mask == 0, axis=-1)      # rows that are not fully padded

    assert alpha.shape == (B, L) and weighted_x.shape == (B, H)
    assert jnp.allclose(alpha[valid], alpha_ref[valid],
                        rtol=1e-4, atol=1e-5), "alpha mismatch"
    assert jnp.allclose(weighted_x[valid], wx_ref[valid],
                        rtol=1e-4, atol=1e-5), "weighted_x mismatch"
    # fully padded row stays finite (uniform weights) instead of NaN
    assert bool(jnp.all(jnp.isfinite(alpha)))
    assert bool(jnp.all(jnp.isfinite(weighted_x)))

    # bf16-input path (halves HBM traffic on v6e/v7x); accumulation stays f32.
    alpha_bf, wx_bf = linear_seq_attn(x.astype(jnp.bfloat16), x_mask,
                                      weight, bias, batch_tile=8)
    jax.block_until_ready((alpha_bf, wx_bf))
    assert jnp.allclose(alpha_bf[valid], alpha_ref[valid], atol=5e-2), "bf16 alpha mismatch"
    assert jnp.allclose(wx_bf[valid], wx_ref[valid], atol=5e-2), "bf16 weighted_x mismatch"

    print("KERNEL_OK")
</pallas_src>

<mosaic_0001>
module attributes {stable_mosaic.version = 11 : i64} {
  func.func @linear_seq_attn_kernel(%arg0: i32, %arg1: memref<8x8x32xf32, #tpu.memory_space<vmem>>, %arg2: memref<8x8xi32, #tpu.memory_space<vmem>>, %arg3: memref<1x32xf32, #tpu.memory_space<vmem>>, %arg4: memref<1x1xf32, #tpu.memory_space<smem>>, %arg5: memref<8x8xf32, #tpu.memory_space<vmem>>, %arg6: memref<8x32xf32, #tpu.memory_space<vmem>>) attributes {dimension_semantics = [#tpu.dimension_semantics<parallel>], iteration_bounds = array<i64: 2>, scalar_prefetch = 0 : i64, scratch_operands = 0 : i64, tpu.core_type = #tpu.core_type<tc>, window_params = [{transform_indices = @transform_0, window_bounds = array<i64: 8, 8, 32>}, {transform_indices = @transform_1, window_bounds = array<i64: 8, 8>}, {pipeline_mode = #tpu.pipeline_mode<synchronous>, transform_indices = @transform_2, window_bounds = array<i64: 1, 32>}, {transform_indices = @transform_3, window_bounds = array<i64: 1, 1>}, {transform_indices = @transform_4, window_bounds = array<i64: 8, 8>}, {transform_indices = @transform_5, window_bounds = array<i64: 8, 32>}]} {
    %c0 = arith.constant 0 : index
    %c0_0 = arith.constant 0 : index
    %0 = vector.load %arg3[%c0, %c0_0] : memref<1x32xf32, #tpu.memory_space<vmem>>, vector<1x32xf32>
    %1 = vector.shape_cast %0 : vector<1x32xf32> to vector<32xf32>
    %c0_1 = arith.constant 0 : index
    %c0_2 = arith.constant 0 : index
    %2 = memref.load %arg4[%c0_1, %c0_2] : memref<1x1xf32, #tpu.memory_space<smem>>
    %c0_3 = arith.constant 0 : index
    %c0_4 = arith.constant 0 : index
    %c0_5 = arith.constant 0 : index
    %3 = vector.load %arg1[%c0_3, %c0_4, %c0_5] : memref<8x8x32xf32, #tpu.memory_space<vmem>>, vector<8x8x32xf32>
    %4 = vector.shape_cast %1 : vector<32xf32> to vector<1x1x32xf32>
    %5 = vector.broadcast %4 : vector<1x1x32xf32> to vector<8x8x32xf32>
    %6 = arith.mulf %3, %5 : vector<8x8x32xf32>
    %cst = arith.constant dense<0.000000e+00> : vector<8x8xf32>
    %7 = vector.multi_reduction <add>, %6, %cst [2] : vector<8x8x32xf32> to vector<8x8xf32>
    %8 = vector.broadcast %2 : f32 to vector<8x8xf32>
    %9 = arith.addf %7, %8 : vector<8x8xf32>
    %c0_6 = arith.constant 0 : index
    %c0_7 = arith.constant 0 : index
    %10 = vector.load %arg2[%c0_6, %c0_7] : memref<8x8xi32, #tpu.memory_space<vmem>>, vector<8x8xi32>
    %c0_i32 = arith.constant 0 : i32
    %11 = vector.broadcast %c0_i32 : i32 to vector<8x8xi32>
    %12 = arith.cmpi ne, %10, %11 : vector<8x8xi32>
    %cst_8 = arith.constant -1.000000e+30 : f32
    %13 = vector.broadcast %cst_8 : f32 to vector<8x8xf32>
    %14 = arith.select %12, %13, %9 : vector<8x8xi1>, vector<8x8xf32>
    %cst_9 = arith.constant dense<0xFF800000> : vector<8xf32>
    %15 = vector.multi_reduction <maximumf>, %14, %cst_9 [1] : vector<8x8xf32> to vector<8xf32>
    %16 = vector.shape_cast %15 : vector<8xf32> to vector<8x1xf32>
    %17 = vector.broadcast %16 : vector<8x1xf32> to vector<8x8xf32>
    %18 = arith.subf %14, %17 : vector<8x8xf32>
    %19 = math.exp %18 : vector<8x8xf32>
    %cst_10 = arith.constant dense<0.000000e+00> : vector<8xf32>
    %20 = vector.multi_reduction <add>, %19, %cst_10 [1] : vector<8x8xf32> to vector<8xf32>
    %21 = vector.shape_cast %20 : vector<8xf32> to vector<8x1xf32>
    %22 = vector.broadcast %21 : vector<8x1xf32> to vector<8x8xf32>
    %23 = arith.divf %19, %22 : vector<8x8xf32>
    %24 = vector.shape_cast %23 : vector<8x8xf32> to vector<8x8x1xf32>
    %c0_11 = arith.constant 0 : index
    %c0_12 = arith.constant 0 : index
    %c0_13 = arith.constant 0 : index
    %25 = vector.load %arg1[%c0_11, %c0_12, %c0_13] : memref<8x8x32xf32, #tpu.memory_space<vmem>>, vector<8x8x32xf32>
    %26 = vector.broadcast %24 : vector<8x8x1xf32> to vector<8x8x32xf32>
    %27 = arith.mulf %26, %25 : vector<8x8x32xf32>
    %cst_14 = arith.constant dense<0.000000e+00> : vector<8x32xf32>
    %28 = vector.multi_reduction <add>, %27, %cst_14 [1] : vector<8x8x32xf32> to vector<8x32xf32>
    %c0_15 = arith.constant 0 : index
    %c0_16 = arith.constant 0 : index
    %29 = vector.load %arg5[%c0_15, %c0_16] : memref<8x8xf32, #tpu.memory_space<vmem>>, vector<8x8xf32>
    tpu.vector_store %arg5[%c0_15, %c0_16], %23 {strides = array<i32>} : memref<8x8xf32, #tpu.memory_space<vmem>>, vector<8x8xf32>,
    %c0_17 = arith.constant 0 : index
    %c0_18 = arith.constant 0 : index
    %30 = vector.load %arg6[%c0_17, %c0_18] : memref<8x32xf32, #tpu.memory_space<vmem>>, vector<8x32xf32>
    tpu.vector_store %arg6[%c0_17, %c0_18], %28 {strides = array<i32>} : memref<8x32xf32, #tpu.memory_space<vmem>>, vector<8x32xf32>,
    return
  }
  func.func @transform_0(%arg0: i32) -> (i32, i32, i32) {
    %c0_i32 = arith.constant 0 : i32
    %c0_i32_0 = arith.constant 0 : i32
    %c0_i32_1 = arith.constant 0 : i32
    return %arg0, %c0_i32, %c0_i32_0 : i32, i32, i32
  }
  func.func @transform_1(%arg0: i32) -> (i32, i32) {
    %c0_i32 = arith.constant 0 : i32
    %c0_i32_0 = arith.constant 0 : i32
    return %arg0, %c0_i32 : i32, i32
  }
  func.func @transform_2(%arg0: i32) -> (i32, i32) {
    %c0_i32 = arith.constant 0 : i32
    %c0_i32_0 = arith.constant 0 : i32
    %c0_i32_1 = arith.constant 0 : i32
    return %c0_i32, %c0_i32_0 : i32, i32
  }
  func.func @transform_3(%arg0: i32) -> (i32, i32) {
    %c0_i32 = arith.constant 0 : i32
    %c0_i32_0 = arith.constant 0 : i32
    %c0_i32_1 = arith.constant 0 : i32
    return %c0_i32, %c0_i32_0 : i32, i32
  }
  func.func @transform_4(%arg0: i32) -> (i32, i32) {
    %c0_i32 = arith.constant 0 : i32
    %c0_i32_0 = arith.constant 0 : i32
    return %arg0, %c0_i32 : i32, i32
  }
  func.func @transform_5(%arg0: i32) -> (i32, i32) {
    %c0_i32 = arith.constant 0 : i32
    %c0_i32_0 = arith.constant 0 : i32
    return %arg0, %c0_i32 : i32, i32
  }
}

</mosaic_0001>

<llo_original>
// kernel: tpu_custom_call.1
$region0: #{tpu_custom_call.1}
  #allocation0 [shape = 'u32[]', space=smem, size = 0x4, offset = 0x4, fixed_abs, tag = 'smem constant byte address 0x4 - core index']
  #allocation1 [shape = 'u32[72,128]{1,0:T(1,128)}', space=vmem, size = 0x9000, scoped, tag = 'internal scratch']
  #allocation2 [shape = 'f32[1,1]{1,0:T(1,128)S(6)}', space=smem, size = 0x200, scoped, tag = 'scoped memory for tpu_custom_call.1']
  %s0 = inlined_call_operand.hbm [shape: f32[16,8,32], index: 0, kind: input, shape index: {}]
  %s1 = inlined_call_operand.vmem [shape: s32[16,8], index: 1, kind: input, shape index: {}]
  %s2 = inlined_call_operand.vmem [shape: f32[1,32], index: 2, kind: input, shape index: {}]
  %s3 = inlined_call_operand.<no memory space> [shape: f32[1,1], index: 3, kind: input, shape index: {}]
  %s4 = inlined_call_operand.vmem [shape: f32[16,8], index: 4, kind: output, shape index: {0}]
  %s5 = inlined_call_operand.hbm [shape: f32[16,32], index: 5, kind: output, shape index: {1}]
  %6 = xla_tuple %s4, %s5
  %s7 = sld [smem:[#allocation0]]
  $region61: #{tpu_custom_call.1} parent=0
    _
  %s9 = ssub.s32 1, %s7
  %s10 = scalar_select 0, %s9, %s7
  %11 = sst [smem:[#allocation2]] %s3
  $region1: #{tpu_custom_call.1} parent=0
    #allocation3 [shape = 'u8[65536]{0}', space=vmem, size = 0x10000, scoped, tag = 'input window, operand 0']
    #allocation4 [shape = 's32[2]{0}', space=sflag, size = 0x8, scoped, tag = 'scoped memory for tpu_custom_call.1']
    #allocation5 [shape = 's32[2]{0}', space=sflag, size = 0x8, scoped, tag = 'scoped memory for tpu_custom_call.1']
    #allocation6 [shape = 'u8[8192]{0}', space=vmem, size = 0x2000, scoped, tag = 'output window, operand 1']
    %12 = vsyncpa [#allocation4], 0
    %s13 = scalar_lea.sflag [#allocation4], 1
    %14 = vsyncpa %s13, 0
    %15 = vsyncpa [#allocation5], 0
    %s16 = scalar_lea.sflag [#allocation5], 1
    %17 = vsyncpa %s16, 0
    loop: start=0, step=1, limit=4
    $region2: #{tpu_custom_call.1} parent=1 // loop_pre_header
      _
    $region3: #{tpu_custom_call.1} parent=1 // loop_header
      %s19 = sphi 0, %s23
      %p20 = scmp.ge.s32.totalorder %s19, 4
      %s29 = sphi 0, %s31
      %s32 = sphi 0, %s29
      %s33 = sphi 0, %s32
      %s49 = sphi 0, %s33
      %s55 = sphi 0, %s57
      %s58 = sphi 0, %s55
      %s59 = sphi 0, %s58
      %s75 = sphi 0, %s59
      %s79 = sphi 0, %s79
      %s81 = sphi 0, %s79
      %s82 = sphi 0, %s81
      %s96 = sphi 0, %s82
      %s100 = sphi 0, %s100
      %s102 = sphi 0, %s100
      %s103 = sphi 0, %s102
      %s117 = sphi 0, %s103
      %s123 = sphi 0, %s125
      %s126 = sphi 0, %s123
      %s127 = sphi 0, %s126
      %s143 = sphi 0, %s127
      %s149 = sphi 0, %s151
      %s152 = sphi 0, %s149
      %s153 = sphi 0, %s152
      %s169 = sphi 0, %s153
    $region4: #{tpu_custom_call.1} parent=1 // loop_header_branch
      %22 = sbr.rel (%p20) target = $region8
    $region5: #{tpu_custom_call.1} parent=1 // loop_body
      %s24 = ssub.s32 %s19, 1
      %s25 = ssub.s32 %s19, 2
      %s26 = sadd.s32 %s19, 1
      %s27 = ssub.s32 %s19, %s26
      %p28 = scmp.eq.s32.totalorder %s27, 0
      %s30 = sadd.s32 %s29, 1
      %s31 = scalar_select %p28, %s29, %s30
      %p34 = pneg %p28
      %p35 = scmp.eq.s32.totalorder %s19, 1
      %p36 = por %p34, %p35
      %p37 = scmp.ne.s32.totalorder %s29, %s32
      %p38 = scmp.eq.s32.totalorder %s19, 0
      %p39 = por %p37, %p38
      %p40 = scmp.ne.s32.totalorder %s29, %s32
      %p41 = scmp.eq.s32.totalorder %s24, 1
      %p42 = por %p40, %p41
      %p43 = scmp.ne.s32.totalorder %s32, %s33
      %p44 = scmp.eq.s32.totalorder %s24, 0
      %p45 = por %p43, %p44
      %p46 = scmp.ne.s32.totalorder %s32, %s33
      %p47 = scmp.eq.s32.totalorder %s25, 1
      %p48 = por %p46, %p47
      %p50 = scmp.ne.s32.totalorder %s33, %s49
      %p51 = scmp.eq.s32.totalorder %s25, 0
      %p52 = por %p50, %p51
      %s53 = ssub.s32 %s19, %s26
      %p54 = scmp.eq.s32.totalorder %s53, 0
      %s56 = sadd.s32 %s55, 1
      %s57 = scalar_select %p54, %s55, %s56
      %p60 = pneg %p54
      %p61 = scmp.eq.s32.totalorder %s19, 1
      %p62 = por %p60, %p61
      %p63 = scmp.ne.s32.totalorder %s55, %s58
      %p64 = scmp.eq.s32.totalorder %s19, 0
      %p65 = por %p63, %p64
      %p66 = scmp.ne.s32.totalorder %s55, %s58
      %p67 = scmp.eq.s32.totalorder %s24, 1
      %p68 = por %p66, %p67
      %p69 = scmp.ne.s32.totalorder %s58, %s59
      %p70 = scmp.eq.s32.totalorder %s24, 0
      %p71 = por %p69, %p70
      %p72 = scmp.ne.s32.totalorder %s58, %s59
      %p73 = scmp.eq.s32.totalorder %s25, 1
      %p74 = por %p72, %p73
      %p76 = scmp.ne.s32.totalorder %s59, %s75
      %p77 = scmp.eq.s32.totalorder %s25, 0
      %p78 = por %p76, %p77
      %s80 = sadd.s32 %s79, 1
      %p83 = scmp.eq.s32.totalorder %s19, 1
      %p84 = scmp.ne.s32.totalorder %s79, %s81
      %p85 = scmp.eq.s32.totalorder %s19, 0
      %p86 = por %p84, %p85
      %p87 = scmp.ne.s32.totalorder %s79, %s81
      %p88 = scmp.eq.s32.totalorder %s24, 1
      %p89 = por %p87, %p88
      %p90 = scmp.ne.s32.totalorder %s81, %s82
      %p91 = scmp.eq.s32.totalorder %s24, 0
      %p92 = por %p90, %p91
      %p93 = scmp.ne.s32.totalorder %s81, %s82
      %p94 = scmp.eq.s32.totalorder %s25, 1
      %p95 = por %p93, %p94
      %p97 = scmp.ne.s32.totalorder %s82, %s96
      %p98 = scmp.eq.s32.totalorder %s25, 0
      %p99 = por %p97, %p98
      %s101 = sadd.s32 %s100, 1
      %p104 = scmp.eq.s32.totalorder %s19, 1
      %p105 = scmp.ne.s32.totalorder %s100, %s102
      %p106 = scmp.eq.s32.totalorder %s19, 0
      %p107 = por %p105, %p106
      %p108 = scmp.ne.s32.totalorder %s100, %s102
      %p109 = scmp.eq.s32.totalorder %s24, 1
      %p110 = por %p108, %p109
      %p111 = scmp.ne.s32.totalorder %s102, %s103
      %p112 = scmp.eq.s32.totalorder %s24, 0
      %p113 = por %p111, %p112
      %p114 = scmp.ne.s32.totalorder %s102, %s103
      %p115 = scmp.eq.s32.totalorder %s25, 1
      %p116 = por %p114, %p115
      %p118 = scmp.ne.s32.totalorder %s103, %s117
      %p119 = scmp.eq.s32.totalorder %s25, 0
      %p120 = por %p118, %p119
      %s121 = ssub.s32 %s19, %s26
      %p122 = scmp.eq.s32.totalorder %s121, 0
      %s124 = sadd.s32 %s123, 1
      %s125 = scalar_select %p122, %s123, %s124
      %p128 = pneg %p122
      %p129 = scmp.eq.s32.totalorder %s19, 1
      %p130 = por %p128, %p129
      %p131 = scmp.ne.s32.totalorder %s123, %s126
      %p132 = scmp.eq.s32.totalorder %s19, 0
      %p133 = por %p131, %p132
      %p134 = scmp.ne.s32.totalorder %s123, %s126
      %p135 = scmp.eq.s32.totalorder %s24, 1
      %p136 = por %p134, %p135
      %p137 = scmp.ne.s32.totalorder %s126, %s127
      %p138 = scmp.eq.s32.totalorder %s24, 0
      %p139 = por %p137, %p138
      %p140 = scmp.ne.s32.totalorder %s126, %s127
      %p141 = scmp.eq.s32.totalorder %s25, 1
      %p142 = por %p140, %p141
      %p144 = scmp.ne.s32.totalorder %s127, %s143
      %p145 = scmp.eq.s32.totalorder %s25, 0
      %p146 = por %p144, %p145
      %s147 = ssub.s32 %s19, %s26
      %p148 = scmp.eq.s32.totalorder %s147, 0
      %s150 = sadd.s32 %s149, 1
      %s151 = scalar_select %p148, %s149, %s150
      %p154 = pneg %p148
      %p155 = scmp.eq.s32.totalorder %s19, 1
      %p156 = por %p154, %p155
      %p157 = scmp.ne.s32.totalorder %s149, %s152
      %p158 = scmp.eq.s32.totalorder %s19, 0
      %p159 = por %p157, %p158
      %p160 = scmp.ne.s32.totalorder %s149, %s152
      %p161 = scmp.eq.s32.totalorder %s24, 1
      %p162 = por %p160, %p161
      %p163 = scmp.ne.s32.totalorder %s152, %s153
      %p164 = scmp.eq.s32.totalorder %s24, 0
      %p165 = por %p163, %p164
      %p166 = scmp.ne.s32.totalorder %s152, %s153
      %p167 = scmp.eq.s32.totalorder %s25, 1
      %p168 = por %p166, %p167
      %p170 = scmp.ne.s32.totalorder %s153, %s169
      %p171 = scmp.eq.s32.totalorder %s25, 0
      %p172 = por %p170, %p171
      %p173 = scmp.le.s32.totalorder 1, %s19
      %p174 = scmp.lt.s32.totalorder %s19, 3
      %p175 = pnand %p173, %p174
      %p176 = pneg %p175
      // Predicated region
      $region9: #{tpu_custom_call.1} parent=5 // pred_check
        _
      $region10: #{tpu_custom_call.1} parent=5 // pred_check_branch
        %178 = sbr.rel (%p175) target = $region12
      $region11: #{tpu_custom_call.1} parent=5 // pred_region
        %s179 = ssub.s32 %s19, 1
        // Predicated region
        $region13: #{tpu_custom_call.1} parent=11 // pred_check
          %p180 = pneg %p92
        $region14: #{tpu_custom_call.1} parent=11 // pred_check_branch
          %182 = sbr.rel (%p180) target = $region16
        $region15: #{tpu_custom_call.1} parent=11 // pred_region
          _
        $region16: #{tpu_custom_call.1} parent=11 // pred_fallthru
          _
        // Predicated region
        $region17: #{tpu_custom_call.1} parent=11 // pred_check
          %p183 = pneg %p113
        $region18: #{tpu_custom_call.1} parent=11 // pred_check_branch
          %185 = sbr.rel (%p183) target = $region20
        $region19: #{tpu_custom_call.1} parent=11 // pred_region
          _
        $region20: #{tpu_custom_call.1} parent=11 // pred_fallthru
          _
      $region12: #{tpu_custom_call.1} parent=5 // pred_fallthru
        _
      %p186 = scmp.lt.s32.totalorder %s19, 2
      // Predicated region
      $region21: #{tpu_custom_call.1} parent=5 // pred_check
        %p187 = pneg %p186
      $region22: #{tpu_custom_call.1} parent=5 // pred_check_branch
        %189 = sbr.rel (%p187) target = $region24
      $region23: #{tpu_custom_call.1} parent=5 // pred_region
        // Predicated region
        $region25: #{tpu_custom_call.1} parent=23 // pred_check
          %p190 = pneg %p39
        $region26: #{tpu_custom_call.1} parent=23 // pred_check_branch
          %192 = sbr.rel (%p190) target = $region28
        $region27: #{tpu_custom_call.1} parent=23 // pred_region
          %s193 = sand.u32 %s29, 1
          %s194 = scalar_lea.sflag [#allocation4], %s193
          %s195 = sand.u32 %s29, 1
          %s196 = smul.addr %s195, 64
          %s197 = scalar_lea.vmem [#allocation3], %s196
          %s198 = smul.u32 8, %s19
          %200 = vsyncadd %s194, 0
          %s201 = smul.addr %s198, 8
          %s202 = scalar_lea.hbm %s0, %s201
          %s203 = sshll.u32 %s202, 4
          %s204 = int_to_ptr.hbm [resolvable:$true] %s203
          %s205 = sshll.u32 %s197, 4
          %s206 = int_to_ptr.vmem [resolvable:$true] %s205
          %211 = dma.hbm_to_vmem [thread:$0]  %s204, 1024, %s206, %s194, 128, 128, 8
        $region28: #{tpu_custom_call.1} parent=23 // pred_fallthru
          _
        // Predicated region
        $region29: #{tpu_custom_call.1} parent=23 // pred_check
          %p212 = pneg %p65
        $region30: #{tpu_custom_call.1} parent=23 // pred_check_branch
          %214 = sbr.rel (%p212) target = $region32
        $region31: #{tpu_custom_call.1} parent=23 // pred_region
          %p215 = scmp.lt.s32.totalorder %s19, 1
          %s216 = scalar_select %p215, %s19, 1
          %s217 = smul.addr %s216, 8
          %s218 = scalar_lea.vmem %s1, %s217
        $region32: #{tpu_custom_call.1} parent=23 // pred_fallthru
          _
      $region24: #{tpu_custom_call.1} parent=5 // pred_fallthru
        _
      %p219 = scmp.le.s32.totalorder 1, %s19
      %p220 = scmp.lt.s32.totalorder %s19, 3
      %p221 = pnand %p219, %p220
      %p222 = pneg %p221
      // Predicated region
      $region33: #{tpu_custom_call.1} parent=5 // pred_check
        _
      $region34: #{tpu_custom_call.1} parent=5 // pred_check_branch
        %224 = sbr.rel (%p221) target = $region36
      $region35: #{tpu_custom_call.1} parent=5 // pred_region
        %s225 = ssub.s32 %s19, 1
        %s226 = sand.u32 %s32, 1
        %s227 = scalar_lea.sflag [#allocation4], %s226
        %s228 = sand.u32 %s32, 1
        %s229 = smul.addr %s228, 64
        %s230 = scalar_lea.vmem [#allocation3], %s229
        // Predicated region
        $region37: #{tpu_custom_call.1} parent=35 // pred_check
          %p231 = pneg %p45
        $region38: #{tpu_custom_call.1} parent=35 // pred_check_branch
          %233 = sbr.rel (%p231) target = $region40
        $region39: #{tpu_custom_call.1} parent=35 // pred_region
          %235 = dma.done %s227, 1024
        $region40: #{tpu_custom_call.1} parent=35 // pred_fallthru
          _
        %s236 = sand.u32 %s32, 1
        %s237 = scalar_lea.sflag [#allocation4], %s236
        %s238 = sand.u32 %s32, 1
        %s239 = smul.addr %s238, 64
        %s240 = scalar_lea.vmem [#allocation3], %s239
        %p241 = pneg %p45
        %p242 = pneg %p42
        %p243 = scmp.lt.s32.totalorder %s24, 1
        %s244 = scalar_select %p243, %s24, 1
        %s245 = smul.addr %s244, 8
        %s246 = scalar_lea.vmem %s1, %s245
        %p247 = pneg %p71
        %p248 = pneg %p68
        %p249 = pneg %p92
        %p250 = pneg %p89
        %p251 = pneg %p113
        %p252 = pneg %p110
        %p253 = pneg %p139
        %p254 = pneg %p136
        %p255 = scmp.lt.s32.totalorder %s24, 1
        %s256 = scalar_select %p255, %s24, 1
        %s257 = smul.addr %s256, 8
        %s258 = scalar_lea.vmem %s4, %s257
        %p259 = pneg %p165
        %p260 = pneg %p162
        %s261 = sand.u32 %s152, 1
        %s262 = scalar_lea.sflag [#allocation5], %s261
        %s263 = sand.u32 %s152, 1
        %s264 = smul.addr %s263, 8
        %s265 = scalar_lea.vmem [#allocation6], %s264
        %s266 = smul.u32 8, %s24
        %p267 = scmp.lt.s32.totalorder %s24, 1
        %s268 = scalar_select %p267, %s24, 1
        %s269 = smul.addr %s268, 8
        %s270 = scalar_lea.vmem %s1, %s269
        %p271 = scmp.lt.s32.totalorder %s24, 1
        %s272 = scalar_select %p271, %s24, 1
        %s273 = smul.addr %s272, 8
        %s274 = scalar_lea.vmem %s4, %s273
        %v275 = vld [vmem:[%s2] sm:$0x1]
        %s276 = sld [smem:[#allocation2]]
        %v277 = vld [vmem:[%s230] sm:$0xff]
        %v278 = vld [vmem:[%s230 + $0x8] sm:$0xff]
        %v279 = vld [vmem:[%s230 + $0x10] sm:$0xff]
        %v280 = vld [vmem:[%s230 + $0x18] sm:$0xff]
        %v281 = vld [vmem:[%s230 + $0x20] sm:$0xff]
        %v282 = vld [vmem:[%s230 + $0x28] sm:$0xff]
        %v283 = vld [vmem:[%s230 + $0x30] sm:$0xff]
        %v284 = vld [vmem:[%s230 + $0x38] sm:$0xff]
        %v286 = vperm.slane %v275, 0
        %v288 = vmul.f32 %v277, %v286
        %v289 = vmul.f32 %v278, %v286
        %v290 = vmul.f32 %v279, %v286
        %v291 = vmul.f32 %v280, %v286
        %v292 = vmul.f32 %v281, %v286
        %v293 = vmul.f32 %v282, %v286
        %v294 = vmul.f32 %v283, %v286
        %v295 = vmul.f32 %v284, %v286
        %vm296 = vcmask 261120
        %v297 = vsel %vm296, %v288, 0.0
        %298 = vadd.xlane.f32.xlu0 %v297
        %v299 = vpop.xlane.xlu0 %298
        %v300 = vsel %vm296, %v289, 0.0
        %301 = vadd.xlane.f32.xlu0 %v300
        %v302 = vpop.xlane.xlu0 %301
        %v303 = vsel %vm296, %v290, 0.0
        %304 = vadd.xlane.f32.xlu0 %v303
        %v305 = vpop.xlane.xlu0 %304
        %v306 = vsel %vm296, %v291, 0.0
        %307 = vadd.xlane.f32.xlu0 %v306
        %v308 = vpop.xlane.xlu0 %307
        %v309 = vsel %vm296, %v292, 0.0
        %310 = vadd.xlane.f32.xlu0 %v309
        %v311 = vpop.xlane.xlu0 %310
        %v312 = vsel %vm296, %v293, 0.0
        %313 = vadd.xlane.f32.xlu0 %v312
        %v314 = vpop.xlane.xlu0 %313
        %v315 = vsel %vm296, %v294, 0.0
        %316 = vadd.xlane.f32.xlu0 %v315
        %v317 = vpop.xlane.xlu0 %316
        %v318 = vsel %vm296, %v295, 0.0
        %319 = vadd.xlane.f32.xlu0 %v318
        %v320 = vpop.xlane.xlu0 %319
        %v321 = vstv %s276
        %v322 = vadd.f32 %v299, %v321
        %v323 = vadd.f32 %v302, %v321
        %v324 = vadd.f32 %v305, %v321
        %v325 = vadd.f32 %v308, %v321
        %v326 = vadd.f32 %v311, %v321
        %v327 = vadd.f32 %v314, %v321
        %v328 = vadd.f32 %v317, %v321
        %v329 = vadd.f32 %v320, %v321
        %v330 = vld [vmem:[%s270] sm:$0xff]
        %vm331 = vcmp.ne.s32.totalorder %v330, 0
        %v340 = vlaneseq
        %v341 = vand.u32 %v340, 127
        %v342 = vperm.slane %v322, %v341
        %v343 = vperm.slane %v323, %v341
        %v344 = vperm.slane %v324, %v341
        %v345 = vperm.slane %v325, %v341
        %v346 = vperm.slane %v326, %v341
        %v347 = vperm.slane %v327, %v341
        %v348 = vperm.slane %v328, %v341
        %v349 = vperm.slane %v329, %v341
        %vm350 = vcmask 1041409
        %v351 = vsel %vm350, %v343, %v342
        %vm352 = vcmask 1042434
        %v353 = vsel %vm352, %v344, %v351
        %vm354 = vcmask 1043459
        %v355 = vsel %vm354, %v345, %v353
        %vm356 = vcmask 1044484
        %v357 = vsel %vm356, %v346, %v355
        %vm358 = vcmask 1045509
        %v359 = vsel %vm358, %v347, %v357
        %vm360 = vcmask 1046534
        %v361 = vsel %vm360, %v348, %v359
        %vm362 = vcmask 1047559
        %v363 = vsel %vm362, %v349, %v361
        %v365 = vsel %vm331, -1e+30, %v363
        %vm366 = vcmask 64512
        %v367 = vsel %vm366, %v365, -inf
        %368 = vmax.xlane.f32.xlu0 %v367
        %v369 = vpop.xlane.xlu0 %368
        %v370 = vsub.f32 %v365, %v369
        %v371 = vmul.f32 %v370, 1.442695
        %v372 = vpow.pop %v371
        %v373 = vsel %vm366, %v372, 0.0
        %374 = vadd.xlane.f32.xlu0 %v373
        %v375 = vpop.xlane.xlu0 %374
        %v376 = vrcp.pop %v375
        %v377 = vmul.f32 %v375, %v376
        %v378 = vsub.f32 1.0, %v377
        %v379 = vmul.f32 %v376, %v378
        %v380 = vadd.f32 %v376, %v379
        %vm381 = vweird.f32 %v375
        %vm382 = vweird.f32 %v376
        %vm383 = vmor %vm381, %vm382
        %v384 = vsel %vm383, %v376, %v380
        %v385 = vand.u32 2147483647, %v375
        %vm386 = vcmp.eq.f32.partialorder %v385, 8.507059e+37
        %v387 = vand.u32 %v375, 2147483648
        %v388 = vor.u32 1.1754944e-38, %v387
        %v389 = vsel %vm386, %v388, %v384
        %v390 = vmul.f32 %v372, %v389
        %v391 = vperm.slane %v390, 0
        %v392 = vlaneseq
        %v393 = vshrl.u32 %v392, 7
        %395 = vset.pattern.permute.xlu0 %v393
        %396 = vperm.xlu0 %395, %v391
        %v397 = vpop.permute.xlu0 %396
        %v398 = vperm.slane %v390, 1
        %v399 = vlaneseq
        %v400 = vshrl.u32 %v399, 7
        %402 = vset.pattern.permute.xlu0 %v400
        %403 = vperm.xlu0 %402, %v398
        %v404 = vpop.permute.xlu0 %403
        %v405 = vperm.slane %v390, 2
        %v406 = vlaneseq
        %v407 = vshrl.u32 %v406, 7
        %409 = vset.pattern.permute.xlu0 %v407
        %410 = vperm.xlu0 %409, %v405
        %v411 = vpop.permute.xlu0 %410
        %v412 = vperm.slane %v390, 3
        %v413 = vlaneseq
        %v414 = vshrl.u32 %v413, 7
        %416 = vset.pattern.permute.xlu0 %v414
        %417 = vperm.xlu0 %416, %v412
        %v418 = vpop.permute.xlu0 %417
        %v419 = vperm.slane %v390, 4
        %v420 = vlaneseq
        %v421 = vshrl.u32 %v420, 7
        %423 = vset.pattern.permute.xlu0 %v421
        %424 = vperm.xlu0 %423, %v419
        %v425 = vpop.permute.xlu0 %424
        %v426 = vperm.slane %v390, 5
        %v427 = vlaneseq
        %v428 = vshrl.u32 %v427, 7
        %430 = vset.pattern.permute.xlu0 %v428
        %431 = vperm.xlu0 %430, %v426
        %v432 = vpop.permute.xlu0 %431
        %v433 = vperm.slane %v390, 6
        %v434 = vlaneseq
        %v435 = vshrl.u32 %v434, 7
        %437 = vset.pattern.permute.xlu0 %v435
        %438 = vperm.xlu0 %437, %v433
        %v439 = vpop.permute.xlu0 %438
        %v440 = vperm.slane %v390, 7
        %v441 = vlaneseq
        %v442 = vshrl.u32 %v441, 7
        %444 = vset.pattern.permute.xlu0 %v442
        %445 = vperm.xlu0 %444, %v440
        %v446 = vpop.permute.xlu0 %445
        %v447 = vmul.f32 %v397, %v277
        %v448 = vmul.f32 %v404, %v278
        %v449 = vmul.f32 %v411, %v279
        %v450 = vmul.f32 %v418, %v280
        %v451 = vmul.f32 %v425, %v281
        %v452 = vmul.f32 %v432, %v282
        %v453 = vmul.f32 %v439, %v283
        %v454 = vmul.f32 %v446, %v284
        %v455 = vsel %vm296, %v447, 0.0
        %v456 = vrot.slane %v455, 4
        %v457 = vadd.f32 %v455, %v456
        %v458 = vrot.slane %v457, 2
        %v459 = vadd.f32 %v457, %v458
        %v460 = vrot.slane %v459, 1
        %v461 = vadd.f32 %v459, %v460
        %v462 = vsel %vm296, %v448, 0.0
        %v463 = vrot.slane %v462, 4
        %v464 = vadd.f32 %v462, %v463
        %v465 = vrot.slane %v464, 2
        %v466 = vadd.f32 %v464, %v465
        %v467 = vrot.slane %v466, 1
        %v468 = vadd.f32 %v466, %v467
        %v469 = vsel %vm296, %v449, 0.0
        %v470 = vrot.slane %v469, 4
        %v471 = vadd.f32 %v469, %v470
        %v472 = vrot.slane %v471, 2
        %v473 = vadd.f32 %v471, %v472
        %v474 = vrot.slane %v473, 1
        %v475 = vadd.f32 %v473, %v474
        %v476 = vsel %vm296, %v450, 0.0
        %v477 = vrot.slane %v476, 4
        %v478 = vadd.f32 %v476, %v477
        %v479 = vrot.slane %v478, 2
        %v480 = vadd.f32 %v478, %v479
        %v481 = vrot.slane %v480, 1
        %v482 = vadd.f32 %v480, %v481
        %v483 = vsel %vm296, %v451, 0.0
        %v484 = vrot.slane %v483, 4
        %v485 = vadd.f32 %v483, %v484
        %v486 = vrot.slane %v485, 2
        %v487 = vadd.f32 %v485, %v486
        %v488 = vrot.slane %v487, 1
        %v489 = vadd.f32 %v487, %v488
        %v490 = vsel %vm296, %v452, 0.0
        %v491 = vrot.slane %v490, 4
        %v492 = vadd.f32 %v490, %v491
        %v493 = vrot.slane %v492, 2
        %v494 = vadd.f32 %v492, %v493
        %v495 = vrot.slane %v494, 1
        %v496 = vadd.f32 %v494, %v495
        %v497 = vsel %vm296, %v453, 0.0
        %v498 = vrot.slane %v497, 4
        %v499 = vadd.f32 %v497, %v498
        %v500 = vrot.slane %v499, 2
        %v501 = vadd.f32 %v499, %v500
        %v502 = vrot.slane %v501, 1
        %v503 = vadd.f32 %v501, %v502
        %v504 = vsel %vm296, %v454, 0.0
        %v505 = vrot.slane %v504, 4
        %v506 = vadd.f32 %v504, %v505
        %v507 = vrot.slane %v506, 2
        %v508 = vadd.f32 %v506, %v507
        %v509 = vrot.slane %v508, 1
        %v510 = vadd.f32 %v508, %v509
        %511 = vst.msk [vmem:[%s274] sm:$0xff] %vm366, %v390
        %v520 = vsel %vm350, %v468, %v461
        %v521 = vsel %vm352, %v475, %v520
        %v522 = vsel %vm354, %v482, %v521
        %v523 = vsel %vm356, %v489, %v522
        %v524 = vsel %vm358, %v496, %v523
        %v525 = vsel %vm360, %v503, %v524
        %v526 = vsel %vm362, %v510, %v525
        %528 = vst.msk [vmem:[%s265] sm:$0xff] %vm296, %v526
        %p529 = scmp.lt.s32.totalorder %s24, 1
        %s530 = scalar_select %p529, %s24, 1
        %s531 = smul.addr %s530, 8
        %s532 = scalar_lea.vmem %s4, %s531
        %s533 = sand.u32 %s152, 1
        %s534 = scalar_lea.sflag [#allocation5], %s533
        %s535 = sand.u32 %s152, 1
        %s536 = smul.addr %s535, 8
        %s537 = scalar_lea.vmem [#allocation6], %s536
        // Predicated region
        $region41: #{tpu_custom_call.1} parent=35 // pred_check
          %p538 = pneg %p136
        $region42: #{tpu_custom_call.1} parent=35 // pred_check_branch
          %540 = sbr.rel (%p538) target = $region44
        $region43: #{tpu_custom_call.1} parent=35 // pred_region
          _
        $region44: #{tpu_custom_call.1} parent=35 // pred_fallthru
          _
        // Predicated region
        $region45: #{tpu_custom_call.1} parent=35 // pred_check
          %p541 = pneg %p162
        $region46: #{tpu_custom_call.1} parent=35 // pred_check_branch
          %543 = sbr.rel (%p541) target = $region48
        $region47: #{tpu_custom_call.1} parent=35 // pred_region
          %545 = vsyncadd %s534, 0
          %s546 = smul.addr %s24, 8
          %s547 = scalar_lea.hbm %s5, %s546
          %s549 = sshll.u32 %s537, 4
          %s550 = int_to_ptr.vmem [resolvable:$true] %s549
          %s551 = sshll.u32 %s547, 4
          %s552 = int_to_ptr.hbm [resolvable:$true] %s551
          %554 = dma.vmem_to_hbm [thread:$0]  %s550, 128, %s552, %s534
        $region48: #{tpu_custom_call.1} parent=35 // pred_fallthru
          _
      $region36: #{tpu_custom_call.1} parent=5 // pred_fallthru
        _
      %p555 = scmp.le.s32.totalorder 2, %s19
      // Predicated region
      $region49: #{tpu_custom_call.1} parent=5 // pred_check
        %p556 = pneg %p555
      $region50: #{tpu_custom_call.1} parent=5 // pred_check_branch
        %558 = sbr.rel (%p556) target = $region52
      $region51: #{tpu_custom_call.1} parent=5 // pred_region
        %s559 = ssub.s32 %s19, 2
        // Predicated region
        $region53: #{tpu_custom_call.1} parent=51 // pred_check
          %p560 = pneg %p142
        $region54: #{tpu_custom_call.1} parent=51 // pred_check_branch
          %562 = sbr.rel (%p560) target = $region56
        $region55: #{tpu_custom_call.1} parent=51 // pred_region
          %p563 = scmp.lt.s32.totalorder %s25, 1
          %s564 = scalar_select %p563, %s25, 1
          %s565 = smul.addr %s564, 8
          %s566 = scalar_lea.vmem %s4, %s565
        $region56: #{tpu_custom_call.1} parent=51 // pred_fallthru
          _
        // Predicated region
        $region57: #{tpu_custom_call.1} parent=51 // pred_check
          %p567 = pneg %p168
        $region58: #{tpu_custom_call.1} parent=51 // pred_check_branch
          %569 = sbr.rel (%p567) target = $region60
        $region59: #{tpu_custom_call.1} parent=51 // pred_region
          %s570 = sand.u32 %s153, 1
          %s571 = scalar_lea.sflag [#allocation5], %s570
          %s572 = sand.u32 %s153, 1
          %s573 = smul.addr %s572, 8
          %s574 = scalar_lea.vmem [#allocation6], %s573
          %576 = dma.done %s571, 128
        $region60: #{tpu_custom_call.1} parent=51 // pred_fallthru
          _
      $region52: #{tpu_custom_call.1} parent=5 // pred_fallthru
        _
    $region6: #{tpu_custom_call.1} parent=1 // loop_footer
      %s23 = sadd.s32 1, %s19
    $region7: #{tpu_custom_call.1} parent=1 // loop_footer_branch
      %18 = sbr.rel target = $region3
    $region8: #{tpu_custom_call.1} parent=1 // loop_exit
      _
    %577 = vsyncpa [#allocation4], 1
    %s578 = scalar_lea.sflag [#allocation4], 1
    %579 = vsyncpa %s578, 1
    %580 = vsyncpa [#allocation5], 1
    %s581 = scalar_lea.sflag [#allocation5], 1
    %582 = vsyncpa %s581, 1

</llo_original>
